<compile_context>
chip_gen: v5e
topology: v5e:2x2
jax: 0.10.0
libtpu: 0.0.40
codegen_flags: <defaults>
</compile_context>

<pallas_src>
import jax
import jax.numpy as jnp
from jax.experimental import pallas as pl
from jax.experimental.pallas import tpu as pltpu


def _forget_kernel(x_ref, w1_ref, b1_ref, w2_ref, b2_ref, o_ref):
    """Fused ForgetLayer tile: channels on sublanes, pixels on lanes.

    x_ref : (1, C, TP)   activation tile (NCHW kept; HW tiled along lanes)
    w1_ref: (Ch, C, 1)   layer1 1x1-conv weight
    b1_ref: (Ch, 1)      layer1 bias
    w2_ref: (C, Ch, 1)   layer2 1x1-conv weight
    b2_ref: (C, 1)       layer2 bias
    o_ref : (1, C, TP)
    """
    x = x_ref[0]                 # (C, TP)
    w1 = w1_ref[...]             # (Ch, C, 1)
    w2 = w2_ref[...]             # (C, Ch, 1)
    ch = w1.shape[0]
    c = w2.shape[0]

    # layer1 (1x1 conv): unrolled tiny channel mix on the VPU.
    # w1[i] is (C, 1) -> lane-broadcast against the (C, TP) block, then a
    # sublane reduction produces one output channel (1, TP).
    # NOTE: for large channel counts (C >= 128) a jnp.dot / MXU formulation
    # would be preferable; at C = 4 the VPU path keeps the kernel HBM-bound.
    h_rows = [jnp.sum(w1[i] * x, axis=0, keepdims=True) for i in range(ch)]
    h = jnp.concatenate(h_rows, axis=0)              # (Ch, TP)
    h = jnp.maximum(h + b1_ref[...], 0.0)            # bias + ReLU

    # layer2 (1x1 conv) + residual add + ReLU.
    z_rows = [jnp.sum(w2[j] * h, axis=0, keepdims=True) for j in range(c)]
    z = jnp.concatenate(z_rows, axis=0)              # (C, TP)
    y = jnp.maximum(z + b2_ref[...] + x, 0.0)

    o_ref[0] = y.astype(o_ref.dtype)


def _pick_pixel_tile(hw, c, itemsize, target_lanes=8192,
                     vmem_budget_bytes=16 * 1024 * 1024):
    """Largest pixel tile that (a) divides HW, (b) is a multiple of 128 when
    tiling, and (c) keeps double-buffered in+out blocks inside a conservative
    VMEM budget (sized with v7x's 64 MiB physical / 32 MiB scoped VMEM in
    mind).  Full extent (hw) is always a legal block dimension."""
    # 2 buffers each for the input and output block.
    cap = max(128, vmem_budget_bytes // (4 * c * itemsize))
    target = min(target_lanes, cap)
    if hw <= target:
        return hw
    best = None
    t = 128
    while t <= target:
        if hw % t == 0:
            best = t
        t += 128
    # No clean 128-multiple divisor <= target: fall back to the full extent.
    return best if best is not None else hw


def forget_layer_forward(x_nchw, w1, b1, w2, b2, *, target_tile=8192):
    """Applies ForgetLayer.

    x_nchw : (N, C, H, W)     float32
    w1     : (C//2, C, 1, 1)  PyTorch Conv2d weight layout
    b1     : (C//2,)
    w2     : (C, C//2, 1, 1)
    b2     : (C,)
    """
    N, C, H, W = x_nchw.shape
    assert C % 2 == 0, "ForgetLayer requires an even channel count"
    Ch = C // 2
    assert w1.shape == (Ch, C, 1, 1) and b1.shape == (Ch,)
    assert w2.shape == (C, Ch, 1, 1) and b2.shape == (C,)

    HW = H * W
    # Keep NCHW; merging the trailing spatial dims is a free reshape (no copy).
    x3 = x_nchw.reshape(N, C, HW)

    # Conv weights (out, in, 1, 1) -> (out, in, 1): the trailing singleton sits
    # on the lane axis so each weight column broadcasts across pixel lanes.
    w1v = w1.reshape(Ch, C, 1)
    w2v = w2.reshape(C, Ch, 1)
    b1v = b1.reshape(Ch, 1)
    b2v = b2.reshape(C, 1)

    tp = _pick_pixel_tile(HW, C, x3.dtype.itemsize, target_lanes=target_tile)
    grid = (N, HW // tp)

    out = pl.pallas_call(
        _forget_kernel,
        out_shape=jax.ShapeDtypeStruct((N, C, HW), x3.dtype),
        grid_spec=pl.GridSpec(
            grid=grid,
            in_specs=[
                pl.BlockSpec((1, C, tp), lambda n, p: (n, 0, p)),   # x tile
                pl.BlockSpec((Ch, C, 1), lambda n, p: (0, 0, 0)),   # W1
                pl.BlockSpec((Ch, 1), lambda n, p: (0, 0)),         # b1
                pl.BlockSpec((C, Ch, 1), lambda n, p: (0, 0, 0)),   # W2
                pl.BlockSpec((C, 1), lambda n, p: (0, 0)),          # b2
            ],
            out_specs=pl.BlockSpec((1, C, tp), lambda n, p: (n, 0, p)),
        ),
        compiler_params=pltpu.CompilerParams(
            dimension_semantics=("parallel", "parallel"),
        ),
    )(x3, w1v, b1v, w2v, b2v)

    # Splitting HW back into (H, W) is again a free reshape.
    return out.reshape(N, C, H, W)


def _reference_forward(x_nchw, w1, b1, w2, b2):
    """Pure-JAX reference mirroring the PyTorch module."""
    N, C, H, W = x_nchw.shape
    x_mat = jnp.transpose(x_nchw, (0, 2, 3, 1)).reshape(-1, C)
    h = jnp.maximum(x_mat @ w1[:, :, 0, 0].T + b1, 0.0)
    y = h @ w2[:, :, 0, 0].T + b2
    y = jnp.maximum(y + x_mat, 0.0)
    return jnp.transpose(y.reshape(N, H, W, C), (0, 3, 1, 2))


if __name__ == "__main__":
    key = jax.random.PRNGKey(0)
    k_x, k_w1, k_b1, k_w2, k_b2 = jax.random.split(key, 5)

    N, C, H, W = 2, 4, 16, 16
    Ch = C // 2

    x = jax.random.normal(k_x, (N, C, H, W), dtype=jnp.float32)

    # Deterministic parameter init (shapes follow nn.Conv2d(in, out, k=1)).
    w1 = jax.random.normal(k_w1, (Ch, C, 1, 1), dtype=jnp.float32) * 0.1
    b1 = jax.random.normal(k_b1, (Ch,), dtype=jnp.float32) * 0.1
    w2 = jax.random.normal(k_w2, (C, Ch, 1, 1), dtype=jnp.float32) * 0.1
    b2 = jax.random.normal(k_b2, (C,), dtype=jnp.float32) * 0.1

    out = forget_layer_forward(x, w1, b1, w2, b2)
    out = jax.block_until_ready(out)

    ref = _reference_forward(x, w1, b1, w2, b2)
    assert out.shape == (N, C, H, W)
    assert jnp.allclose(out, ref, atol=1e-5, rtol=1e-5), "mismatch vs reference"

    print("KERNEL_OK")
</pallas_src>

<mosaic_0001>
module attributes {stable_mosaic.version = 11 : i64} {
  func.func @_forget_kernel(%arg0: i32, %arg1: i32, %arg2: memref<1x4x256xf32, #tpu.memory_space<vmem>>, %arg3: memref<2x4x1xf32, #tpu.memory_space<vmem>>, %arg4: memref<2x1xf32, #tpu.memory_space<vmem>>, %arg5: memref<4x2x1xf32, #tpu.memory_space<vmem>>, %arg6: memref<4x1xf32, #tpu.memory_space<vmem>>, %arg7: memref<1x4x256xf32, #tpu.memory_space<vmem>>) attributes {dimension_semantics = [#tpu.dimension_semantics<parallel>, #tpu.dimension_semantics<parallel>], iteration_bounds = array<i64: 2, 1>, scalar_prefetch = 0 : i64, scratch_operands = 0 : i64, tpu.core_type = #tpu.core_type<tc>, window_params = [{transform_indices = @transform_0, window_bounds = array<i64: 1, 4, 256>}, {pipeline_mode = #tpu.pipeline_mode<synchronous>, transform_indices = @transform_1, window_bounds = array<i64: 2, 4, 1>}, {pipeline_mode = #tpu.pipeline_mode<synchronous>, transform_indices = @transform_2, window_bounds = array<i64: 2, 1>}, {pipeline_mode = #tpu.pipeline_mode<synchronous>, transform_indices = @transform_3, window_bounds = array<i64: 4, 2, 1>}, {pipeline_mode = #tpu.pipeline_mode<synchronous>, transform_indices = @transform_4, window_bounds = array<i64: 4, 1>}, {transform_indices = @transform_5, window_bounds = array<i64: 1, 4, 256>}]} {
    %c0 = arith.constant 0 : index
    %c0_0 = arith.constant 0 : index
    %c0_1 = arith.constant 0 : index
    %0 = vector.load %arg2[%c0, %c0_0, %c0_1] : memref<1x4x256xf32, #tpu.memory_space<vmem>>, vector<1x4x256xf32>
    %1 = vector.shape_cast %0 : vector<1x4x256xf32> to vector<4x256xf32>
    %c0_2 = arith.constant 0 : index
    %c0_3 = arith.constant 0 : index
    %c0_4 = arith.constant 0 : index
    %2 = vector.load %arg3[%c0_2, %c0_3, %c0_4] : memref<2x4x1xf32, #tpu.memory_space<vmem>>, vector<2x4x1xf32>
    %c0_5 = arith.constant 0 : index
    %c0_6 = arith.constant 0 : index
    %c0_7 = arith.constant 0 : index
    %3 = vector.load %arg5[%c0_5, %c0_6, %c0_7] : memref<4x2x1xf32, #tpu.memory_space<vmem>>, vector<4x2x1xf32>
    %4 = vector.extract_strided_slice %2 {offsets = [0, 0, 0], sizes = [1, 4, 1], strides = [1, 1, 1]} : vector<2x4x1xf32> to vector<1x4x1xf32>
    %5 = vector.shape_cast %4 : vector<1x4x1xf32> to vector<4x1xf32>
    %6 = vector.broadcast %5 : vector<4x1xf32> to vector<4x256xf32>
    %7 = arith.mulf %6, %1 : vector<4x256xf32>
    %cst = arith.constant dense<0.000000e+00> : vector<256xf32>
    %8 = vector.multi_reduction <add>, %7, %cst [0] : vector<4x256xf32> to vector<256xf32>
    %9 = vector.shape_cast %8 : vector<256xf32> to vector<1x256xf32>
    %10 = vector.extract_strided_slice %2 {offsets = [1, 0, 0], sizes = [1, 4, 1], strides = [1, 1, 1]} : vector<2x4x1xf32> to vector<1x4x1xf32>
    %11 = vector.shape_cast %10 : vector<1x4x1xf32> to vector<4x1xf32>
    %12 = vector.broadcast %11 : vector<4x1xf32> to vector<4x256xf32>
    %13 = arith.mulf %12, %1 : vector<4x256xf32>
    %cst_8 = arith.constant dense<0.000000e+00> : vector<256xf32>
    %14 = vector.multi_reduction <add>, %13, %cst_8 [0] : vector<4x256xf32> to vector<256xf32>
    %15 = vector.shape_cast %14 : vector<256xf32> to vector<1x256xf32>
    %16 = tpu.concatenate %9, %15 in 0 : vector<1x256xf32>, vector<1x256xf32> -> vector<2x256xf32>
    %c0_9 = arith.constant 0 : index
    %c0_10 = arith.constant 0 : index
    %17 = vector.load %arg4[%c0_9, %c0_10] : memref<2x1xf32, #tpu.memory_space<vmem>>, vector<2x1xf32>
    %18 = vector.broadcast %17 : vector<2x1xf32> to vector<2x256xf32>
    %19 = arith.addf %16, %18 : vector<2x256xf32>
    %cst_11 = arith.constant 0.000000e+00 : f32
    %20 = vector.broadcast %cst_11 : f32 to vector<2x256xf32>
    %21 = arith.maximumf %19, %20 : vector<2x256xf32>
    %22 = vector.extract_strided_slice %3 {offsets = [0, 0, 0], sizes = [1, 2, 1], strides = [1, 1, 1]} : vector<4x2x1xf32> to vector<1x2x1xf32>
    %23 = vector.shape_cast %22 : vector<1x2x1xf32> to vector<2x1xf32>
    %24 = vector.broadcast %23 : vector<2x1xf32> to vector<2x256xf32>
    %25 = arith.mulf %24, %21 : vector<2x256xf32>
    %cst_12 = arith.constant dense<0.000000e+00> : vector<256xf32>
    %26 = vector.multi_reduction <add>, %25, %cst_12 [0] : vector<2x256xf32> to vector<256xf32>
    %27 = vector.shape_cast %26 : vector<256xf32> to vector<1x256xf32>
    %28 = vector.extract_strided_slice %3 {offsets = [1, 0, 0], sizes = [1, 2, 1], strides = [1, 1, 1]} : vector<4x2x1xf32> to vector<1x2x1xf32>
    %29 = vector.shape_cast %28 : vector<1x2x1xf32> to vector<2x1xf32>
    %30 = vector.broadcast %29 : vector<2x1xf32> to vector<2x256xf32>
    %31 = arith.mulf %30, %21 : vector<2x256xf32>
    %cst_13 = arith.constant dense<0.000000e+00> : vector<256xf32>
    %32 = vector.multi_reduction <add>, %31, %cst_13 [0] : vector<2x256xf32> to vector<256xf32>
    %33 = vector.shape_cast %32 : vector<256xf32> to vector<1x256xf32>
    %34 = vector.extract_strided_slice %3 {offsets = [2, 0, 0], sizes = [1, 2, 1], strides = [1, 1, 1]} : vector<4x2x1xf32> to vector<1x2x1xf32>
    %35 = vector.shape_cast %34 : vector<1x2x1xf32> to vector<2x1xf32>
    %36 = vector.broadcast %35 : vector<2x1xf32> to vector<2x256xf32>
    %37 = arith.mulf %36, %21 : vector<2x256xf32>
    %cst_14 = arith.constant dense<0.000000e+00> : vector<256xf32>
    %38 = vector.multi_reduction <add>, %37, %cst_14 [0] : vector<2x256xf32> to vector<256xf32>
    %39 = vector.shape_cast %38 : vector<256xf32> to vector<1x256xf32>
    %40 = vector.extract_strided_slice %3 {offsets = [3, 0, 0], sizes = [1, 2, 1], strides = [1, 1, 1]} : vector<4x2x1xf32> to vector<1x2x1xf32>
    %41 = vector.shape_cast %40 : vector<1x2x1xf32> to vector<2x1xf32>
    %42 = vector.broadcast %41 : vector<2x1xf32> to vector<2x256xf32>
    %43 = arith.mulf %42, %21 : vector<2x256xf32>
    %cst_15 = arith.constant dense<0.000000e+00> : vector<256xf32>
    %44 = vector.multi_reduction <add>, %43, %cst_15 [0] : vector<2x256xf32> to vector<256xf32>
    %45 = vector.shape_cast %44 : vector<256xf32> to vector<1x256xf32>
    %46 = tpu.concatenate %27, %33, %39, %45 in 0 : vector<1x256xf32>, vector<1x256xf32>, vector<1x256xf32>, vector<1x256xf32> -> vector<4x256xf32>
    %c0_16 = arith.constant 0 : index
    %c0_17 = arith.constant 0 : index
    %47 = vector.load %arg6[%c0_16, %c0_17] : memref<4x1xf32, #tpu.memory_space<vmem>>, vector<4x1xf32>
    %48 = vector.broadcast %47 : vector<4x1xf32> to vector<4x256xf32>
    %49 = arith.addf %46, %48 : vector<4x256xf32>
    %50 = arith.addf %49, %1 : vector<4x256xf32>
    %cst_18 = arith.constant 0.000000e+00 : f32
    %51 = vector.broadcast %cst_18 : f32 to vector<4x256xf32>
    %52 = arith.maximumf %50, %51 : vector<4x256xf32>
    %c0_19 = arith.constant 0 : index
    %c0_20 = arith.constant 0 : index
    %c0_21 = arith.constant 0 : index
    %53 = vector.load %arg7[%c0_19, %c0_20, %c0_21] : memref<1x4x256xf32, #tpu.memory_space<vmem>>, vector<1x4x256xf32>
    %54 = vector.shape_cast %53 : vector<1x4x256xf32> to vector<4x256xf32>
    %55 = vector.shape_cast %52 : vector<4x256xf32> to vector<1x4x256xf32>
    tpu.vector_store %arg7[%c0_19, %c0_20, %c0_21], %55 {strides = array<i32>} : memref<1x4x256xf32, #tpu.memory_space<vmem>>, vector<1x4x256xf32>,
    return
  }
  func.func @transform_0(%arg0: i32, %arg1: i32) -> (i32, i32, i32) {
    %c0_i32 = arith.constant 0 : i32
    %c0_i32_0 = arith.constant 0 : i32
    return %arg0, %c0_i32, %arg1 : i32, i32, i32
  }
  func.func @transform_1(%arg0: i32, %arg1: i32) -> (i32, i32, i32) {
    %c0_i32 = arith.constant 0 : i32
    %c0_i32_0 = arith.constant 0 : i32
    %c0_i32_1 = arith.constant 0 : i32
    %c0_i32_2 = arith.constant 0 : i32
    return %c0_i32, %c0_i32_0, %c0_i32_1 : i32, i32, i32
  }
  func.func @transform_2(%arg0: i32, %arg1: i32) -> (i32, i32) {
    %c0_i32 = arith.constant 0 : i32
    %c0_i32_0 = arith.constant 0 : i32
    %c0_i32_1 = arith.constant 0 : i32
    return %c0_i32, %c0_i32_0 : i32, i32
  }
  func.func @transform_3(%arg0: i32, %arg1: i32) -> (i32, i32, i32) {
    %c0_i32 = arith.constant 0 : i32
    %c0_i32_0 = arith.constant 0 : i32
    %c0_i32_1 = arith.constant 0 : i32
    %c0_i32_2 = arith.constant 0 : i32
    return %c0_i32, %c0_i32_0, %c0_i32_1 : i32, i32, i32
  }
  func.func @transform_4(%arg0: i32, %arg1: i32) -> (i32, i32) {
    %c0_i32 = arith.constant 0 : i32
    %c0_i32_0 = arith.constant 0 : i32
    %c0_i32_1 = arith.constant 0 : i32
    return %c0_i32, %c0_i32_0 : i32, i32
  }
  func.func @transform_5(%arg0: i32, %arg1: i32) -> (i32, i32, i32) {
    %c0_i32 = arith.constant 0 : i32
    %c0_i32_0 = arith.constant 0 : i32
    return %arg0, %c0_i32, %arg1 : i32, i32, i32
  }
}

</mosaic_0001>

<llo_original>
// kernel: tpu_custom_call.1
$region0: #{tpu_custom_call.1}
  #allocation0 [shape = 'u32[]', space=smem, size = 0x4, offset = 0x4, fixed_abs, tag = 'smem constant byte address 0x4 - core index']
  #allocation1 [shape = 'u32[72,128]{1,0:T(1,128)}', space=vmem, size = 0x9000, scoped, tag = 'internal scratch']
  %s0 = inlined_call_operand.vmem [shape: f32[2,4,256], index: 0, kind: input, shape index: {}]
  %s1 = inlined_call_operand.vmem [shape: f32[2,4,1], index: 1, kind: input, shape index: {}]
  %s2 = inlined_call_operand.vmem [shape: f32[2,1], index: 2, kind: input, shape index: {}]
  %s3 = inlined_call_operand.vmem [shape: f32[4,2,1], index: 3, kind: input, shape index: {}]
  %s4 = inlined_call_operand.vmem [shape: f32[4,1], index: 4, kind: input, shape index: {}]
  %s5 = inlined_call_operand.hbm [shape: f32[2,4,256], index: 5, kind: output, shape index: {}]
  %s6 = sld [smem:[#allocation0]]
  $region53: #{tpu_custom_call.1} parent=0
    _
  %s8 = ssub.s32 1, %s6
  %s9 = scalar_select 0, %s8, %s6
  $region1: #{tpu_custom_call.1} parent=0
    #allocation2 [shape = 'u8[8192]{0}', space=vmem, size = 0x2000, scoped, tag = 'output window, operand 0']
    #allocation3 [shape = 's32[2]{0}', space=sflag, size = 0x8, scoped, tag = 'scoped memory for tpu_custom_call.1']
    %10 = vsyncpa [#allocation3], 0
    %s11 = scalar_lea.sflag [#allocation3], 1
    %12 = vsyncpa %s11, 0
    loop: start=0, step=1, limit=4
    $region2: #{tpu_custom_call.1} parent=1 // loop_pre_header
      _
    $region3: #{tpu_custom_call.1} parent=1 // loop_header
      %s14 = sphi 0, %s18
      %p15 = scmp.ge.s32.totalorder %s14, 4
      %s21 = sphi 0, %s33
      %s22 = sphi 0, %s29
      %s23 = sphi 0, %s21
      %s24 = sphi 0, %s22
      %s25 = sphi 0, %s23
      %s26 = sphi 0, %s24
      %s38 = sphi 0, %s40
      %s41 = sphi 0, %s38
      %s42 = sphi 0, %s41
      %s58 = sphi 0, %s42
      %s62 = sphi 0, %s62
      %s64 = sphi 0, %s62
      %s65 = sphi 0, %s64
      %s79 = sphi 0, %s65
      %s83 = sphi 0, %s83
      %s85 = sphi 0, %s83
      %s86 = sphi 0, %s85
      %s100 = sphi 0, %s86
      %s104 = sphi 0, %s104
      %s106 = sphi 0, %s104
      %s107 = sphi 0, %s106
      %s121 = sphi 0, %s107
      %s125 = sphi 0, %s125
      %s127 = sphi 0, %s125
      %s128 = sphi 0, %s127
      %s142 = sphi 0, %s128
      %s150 = sphi 0, %s152
      %s153 = sphi 0, %s150
      %s154 = sphi 0, %s153
      %s170 = sphi 0, %s154
    $region4: #{tpu_custom_call.1} parent=1 // loop_header_branch
      %17 = sbr.rel (%p15) target = $region8
    $region5: #{tpu_custom_call.1} parent=1 // loop_body
      %s19 = ssub.s32 %s14, 1
      %s20 = ssub.s32 %s14, 2
      %s27 = sadd.s32 1, %s22
      %p28 = scmp.ge.s32.totalorder %s27, 1
      %s29 = scalar_select %p28, 0, %s27
      %s30 = sadd.s32 1, %s21
      %s31 = scalar_select %p28, %s30, %s21
      %p32 = scmp.ge.s32.totalorder %s31, 2
      %s33 = scalar_select %p32, 0, %s31
      %s34 = ssub.s32 %s21, %s33
      %s35 = ssub.s32 %s22, %s29
      %s36 = sor.u32 %s34, %s35
      %p37 = scmp.eq.s32.totalorder %s36, 0
      %s39 = sadd.s32 %s38, 1
      %s40 = scalar_select %p37, %s38, %s39
      %p43 = pneg %p37
      %p44 = scmp.eq.s32.totalorder %s14, 1
      %p45 = por %p43, %p44
      %p46 = scmp.ne.s32.totalorder %s38, %s41
      %p47 = scmp.eq.s32.totalorder %s14, 0
      %p48 = por %p46, %p47
      %p49 = scmp.ne.s32.totalorder %s38, %s41
      %p50 = scmp.eq.s32.totalorder %s19, 1
      %p51 = por %p49, %p50
      %p52 = scmp.ne.s32.totalorder %s41, %s42
      %p53 = scmp.eq.s32.totalorder %s19, 0
      %p54 = por %p52, %p53
      %p55 = scmp.ne.s32.totalorder %s41, %s42
      %p56 = scmp.eq.s32.totalorder %s20, 1
      %p57 = por %p55, %p56
      %p59 = scmp.ne.s32.totalorder %s42, %s58
      %p60 = scmp.eq.s32.totalorder %s20, 0
      %p61 = por %p59, %p60
      %s63 = sadd.s32 %s62, 1
      %p66 = scmp.eq.s32.totalorder %s14, 1
      %p67 = scmp.ne.s32.totalorder %s62, %s64
      %p68 = scmp.eq.s32.totalorder %s14, 0
      %p69 = por %p67, %p68
      %p70 = scmp.ne.s32.totalorder %s62, %s64
      %p71 = scmp.eq.s32.totalorder %s19, 1
      %p72 = por %p70, %p71
      %p73 = scmp.ne.s32.totalorder %s64, %s65
      %p74 = scmp.eq.s32.totalorder %s19, 0
      %p75 = por %p73, %p74
      %p76 = scmp.ne.s32.totalorder %s64, %s65
      %p77 = scmp.eq.s32.totalorder %s20, 1
      %p78 = por %p76, %p77
      %p80 = scmp.ne.s32.totalorder %s65, %s79
      %p81 = scmp.eq.s32.totalorder %s20, 0
      %p82 = por %p80, %p81
      %s84 = sadd.s32 %s83, 1
      %p87 = scmp.eq.s32.totalorder %s14, 1
      %p88 = scmp.ne.s32.totalorder %s83, %s85
      %p89 = scmp.eq.s32.totalorder %s14, 0
      %p90 = por %p88, %p89
      %p91 = scmp.ne.s32.totalorder %s83, %s85
      %p92 = scmp.eq.s32.totalorder %s19, 1
      %p93 = por %p91, %p92
      %p94 = scmp.ne.s32.totalorder %s85, %s86
      %p95 = scmp.eq.s32.totalorder %s19, 0
      %p96 = por %p94, %p95
      %p97 = scmp.ne.s32.totalorder %s85, %s86
      %p98 = scmp.eq.s32.totalorder %s20, 1
      %p99 = por %p97, %p98
      %p101 = scmp.ne.s32.totalorder %s86, %s100
      %p102 = scmp.eq.s32.totalorder %s20, 0
      %p103 = por %p101, %p102
      %s105 = sadd.s32 %s104, 1
      %p108 = scmp.eq.s32.totalorder %s14, 1
      %p109 = scmp.ne.s32.totalorder %s104, %s106
      %p110 = scmp.eq.s32.totalorder %s14, 0
      %p111 = por %p109, %p110
      %p112 = scmp.ne.s32.totalorder %s104, %s106
      %p113 = scmp.eq.s32.totalorder %s19, 1
      %p114 = por %p112, %p113
      %p115 = scmp.ne.s32.totalorder %s106, %s107
      %p116 = scmp.eq.s32.totalorder %s19, 0
      %p117 = por %p115, %p116
      %p118 = scmp.ne.s32.totalorder %s106, %s107
      %p119 = scmp.eq.s32.totalorder %s20, 1
      %p120 = por %p118, %p119
      %p122 = scmp.ne.s32.totalorder %s107, %s121
      %p123 = scmp.eq.s32.totalorder %s20, 0
      %p124 = por %p122, %p123
      %s126 = sadd.s32 %s125, 1
      %p129 = scmp.eq.s32.totalorder %s14, 1
      %p130 = scmp.ne.s32.totalorder %s125, %s127
      %p131 = scmp.eq.s32.totalorder %s14, 0
      %p132 = por %p130, %p131
      %p133 = scmp.ne.s32.totalorder %s125, %s127
      %p134 = scmp.eq.s32.totalorder %s19, 1
      %p135 = por %p133, %p134
      %p136 = scmp.ne.s32.totalorder %s127, %s128
      %p137 = scmp.eq.s32.totalorder %s19, 0
      %p138 = por %p136, %p137
      %p139 = scmp.ne.s32.totalorder %s127, %s128
      %p140 = scmp.eq.s32.totalorder %s20, 1
      %p141 = por %p139, %p140
      %p143 = scmp.ne.s32.totalorder %s128, %s142
      %p144 = scmp.eq.s32.totalorder %s20, 0
      %p145 = por %p143, %p144
      %s146 = ssub.s32 %s21, %s33
      %s147 = ssub.s32 %s22, %s29
      %s148 = sor.u32 %s146, %s147
      %p149 = scmp.eq.s32.totalorder %s148, 0
      %s151 = sadd.s32 %s150, 1
      %s152 = scalar_select %p149, %s150, %s151
      %p155 = pneg %p149
      %p156 = scmp.eq.s32.totalorder %s14, 1
      %p157 = por %p155, %p156
      %p158 = scmp.ne.s32.totalorder %s150, %s153
      %p159 = scmp.eq.s32.totalorder %s14, 0
      %p160 = por %p158, %p159
      %p161 = scmp.ne.s32.totalorder %s150, %s153
      %p162 = scmp.eq.s32.totalorder %s19, 1
      %p163 = por %p161, %p162
      %p164 = scmp.ne.s32.totalorder %s153, %s154
      %p165 = scmp.eq.s32.totalorder %s19, 0
      %p166 = por %p164, %p165
      %p167 = scmp.ne.s32.totalorder %s153, %s154
      %p168 = scmp.eq.s32.totalorder %s20, 1
      %p169 = por %p167, %p168
      %p171 = scmp.ne.s32.totalorder %s154, %s170
      %p172 = scmp.eq.s32.totalorder %s20, 0
      %p173 = por %p171, %p172
      %p174 = scmp.le.s32.totalorder 1, %s14
      %p175 = scmp.lt.s32.totalorder %s14, 3
      %p176 = pnand %p174, %p175
      %p177 = pneg %p176
      // Predicated region
      $region9: #{tpu_custom_call.1} parent=5 // pred_check
        _
      $region10: #{tpu_custom_call.1} parent=5 // pred_check_branch
        %179 = sbr.rel (%p176) target = $region12
      $region11: #{tpu_custom_call.1} parent=5 // pred_region
        %s180 = ssub.s32 %s14, 1
        // Predicated region
        $region13: #{tpu_custom_call.1} parent=11 // pred_check
          %p181 = pneg %p75
        $region14: #{tpu_custom_call.1} parent=11 // pred_check_branch
          %183 = sbr.rel (%p181) target = $region16
        $region15: #{tpu_custom_call.1} parent=11 // pred_region
          _
        $region16: #{tpu_custom_call.1} parent=11 // pred_fallthru
          _
        // Predicated region
        $region17: #{tpu_custom_call.1} parent=11 // pred_check
          %p184 = pneg %p96
        $region18: #{tpu_custom_call.1} parent=11 // pred_check_branch
          %186 = sbr.rel (%p184) target = $region20
        $region19: #{tpu_custom_call.1} parent=11 // pred_region
          _
        $region20: #{tpu_custom_call.1} parent=11 // pred_fallthru
          _
        // Predicated region
        $region21: #{tpu_custom_call.1} parent=11 // pred_check
          %p187 = pneg %p117
        $region22: #{tpu_custom_call.1} parent=11 // pred_check_branch
          %189 = sbr.rel (%p187) target = $region24
        $region23: #{tpu_custom_call.1} parent=11 // pred_region
          _
        $region24: #{tpu_custom_call.1} parent=11 // pred_fallthru
          _
        // Predicated region
        $region25: #{tpu_custom_call.1} parent=11 // pred_check
          %p190 = pneg %p138
        $region26: #{tpu_custom_call.1} parent=11 // pred_check_branch
          %192 = sbr.rel (%p190) target = $region28
        $region27: #{tpu_custom_call.1} parent=11 // pred_region
          _
        $region28: #{tpu_custom_call.1} parent=11 // pred_fallthru
          _
      $region12: #{tpu_custom_call.1} parent=5 // pred_fallthru
        _
      %p193 = scmp.lt.s32.totalorder %s14, 2
      // Predicated region
      $region29: #{tpu_custom_call.1} parent=5 // pred_check
        %p194 = pneg %p193
      $region30: #{tpu_custom_call.1} parent=5 // pred_check_branch
        %196 = sbr.rel (%p194) target = $region32
      $region31: #{tpu_custom_call.1} parent=5 // pred_region
        // Predicated region
        $region33: #{tpu_custom_call.1} parent=31 // pred_check
          %p197 = pneg %p48
        $region34: #{tpu_custom_call.1} parent=31 // pred_check_branch
          %199 = sbr.rel (%p197) target = $region36
        $region35: #{tpu_custom_call.1} parent=31 // pred_region
          %s200 = smul.u32 2, %s22
          %p201 = scmp.lt.s32.totalorder %s21, 1
          %s202 = scalar_select %p201, %s21, 1
          %p203 = scmp.lt.s32.totalorder %s200, 1
          %s204 = scalar_select %p203, %s200, 1
          %s205 = smul.addr %s202, 2
          %s206 = sadd.s32 %s204, %s205
          %s207 = smul.addr %s206, 4
          %s208 = scalar_lea.vmem %s0, %s207
          %s209 = smul.u32 2, %s22
        $region36: #{tpu_custom_call.1} parent=31 // pred_fallthru
          _
      $region32: #{tpu_custom_call.1} parent=5 // pred_fallthru
        _
      %p210 = scmp.le.s32.totalorder 1, %s14
      %p211 = scmp.lt.s32.totalorder %s14, 3
      %p212 = pnand %p210, %p211
      %p213 = pneg %p212
      // Predicated region
      $region37: #{tpu_custom_call.1} parent=5 // pred_check
        _
      $region38: #{tpu_custom_call.1} parent=5 // pred_check_branch
        %215 = sbr.rel (%p212) target = $region40
      $region39: #{tpu_custom_call.1} parent=5 // pred_region
        %s216 = ssub.s32 %s14, 1
        %s217 = smul.u32 2, %s24
        %p218 = scmp.lt.s32.totalorder %s23, 1
        %s219 = scalar_select %p218, %s23, 1
        %p220 = scmp.lt.s32.totalorder %s217, 1
        %s221 = scalar_select %p220, %s217, 1
        %s222 = smul.addr %s219, 2
        %s223 = sadd.s32 %s221, %s222
        %s224 = smul.addr %s223, 4
        %s225 = scalar_lea.vmem %s0, %s224
        %p226 = pneg %p54
        %p227 = pneg %p51
        %p228 = pneg %p75
        %p229 = pneg %p72
        %p230 = pneg %p96
        %p231 = pneg %p93
        %p232 = pneg %p117
        %p233 = pneg %p114
        %p234 = pneg %p138
        %p235 = pneg %p135
        %p236 = pneg %p166
        %p237 = pneg %p163
        %s238 = sand.u32 %s153, 1
        %s239 = scalar_lea.sflag [#allocation3], %s238
        %s240 = sand.u32 %s153, 1
        %s241 = smul.addr %s240, 8
        %s242 = scalar_lea.vmem [#allocation2], %s241
        %s243 = smul.u32 2, %s24
        %p244 = scmp.lt.s32.totalorder %s23, 1
        %s245 = scalar_select %p244, %s23, 1
        %p246 = scmp.lt.s32.totalorder %s243, 1
        %s247 = scalar_select %p246, %s243, 1
        %s248 = smul.addr %s245, 2
        %s249 = sadd.s32 %s247, %s248
        %s250 = smul.addr %s249, 4
        %s251 = scalar_lea.vmem %s0, %s250
        %s252 = smul.u32 2, %s24
        %s253 = smul.u32 2, %s24
        %v254 = vld [vmem:[%s251] sm:$0xff]
        %v255 = vld [vmem:[%s1] sm:$0xf]
        %v256 = vld [vmem:[%s1 + $0x4] sm:$0xf]
        %v257 = vld [vmem:[%s3] sm:$0x3]
        %v258 = vld [vmem:[%s3 + $0x2] sm:$0x3]
        %v259 = vld [vmem:[%s3 + $0x4] sm:$0x3]
        %v260 = vld [vmem:[%s3 + $0x6] sm:$0x3]
        %262 = vset.pattern.permute.xlu0 0
        %263 = vperm.xlu0 %262, %v255
        %v264 = vpop.permute.xlu0 %263
        %267 = vst [vmem:[#allocation1] ss:$2 sm:$0xff] %v254
        %v268 = vld.sshfl [vmem:[#allocation1] sm:$0xff pattern:$0x75316420]
        %v269 = vld.sshfl [vmem:[#allocation1 + $0x8] sm:$0xff pattern:$0x75316420]
        %v272 = vmul.f32 %v264, %v268
        %v273 = vmul.f32 %v264, %v269
        %vm274 = vcmask 1043456
        %v275 = vsel %vm274, %v272, 0.0
        %v276 = vrot.slane %v275, 4
        %v277 = vadd.f32 %v275, %v276
        %v278 = vrot.slane %v277, 2
        %v279 = vadd.f32 %v277, %v278
        %v280 = vrot.slane %v279, 1
        %v281 = vadd.f32 %v279, %v280
        %v282 = vsel %vm274, %v273, 0.0
        %v283 = vrot.slane %v282, 4
        %v284 = vadd.f32 %v282, %v283
        %v285 = vrot.slane %v284, 2
        %v286 = vadd.f32 %v284, %v285
        %v287 = vrot.slane %v286, 1
        %v288 = vadd.f32 %v286, %v287
        %290 = vset.pattern.permute.xlu0 0
        %291 = vperm.xlu0 %290, %v256
        %v292 = vpop.permute.xlu0 %291
        %294 = vst [vmem:[#allocation1] ss:$2 sm:$0xff] %v254
        %v295 = vld.sshfl [vmem:[#allocation1] sm:$0xff pattern:$0x75316420]
        %v296 = vld.sshfl [vmem:[#allocation1 + $0x8] sm:$0xff pattern:$0x75316420]
        %v299 = vmul.f32 %v292, %v295
        %v300 = vmul.f32 %v292, %v296
        %v301 = vsel %vm274, %v299, 0.0
        %v302 = vrot.slane %v301, 4
        %v303 = vadd.f32 %v301, %v302
        %v304 = vrot.slane %v303, 2
        %v305 = vadd.f32 %v303, %v304
        %v306 = vrot.slane %v305, 1
        %v307 = vadd.f32 %v305, %v306
        %v308 = vsel %vm274, %v300, 0.0
        %v309 = vrot.slane %v308, 4
        %v310 = vadd.f32 %v308, %v309
        %v311 = vrot.slane %v310, 2
        %v312 = vadd.f32 %v310, %v311
        %v313 = vrot.slane %v312, 1
        %v314 = vadd.f32 %v312, %v313
        %vm315 = vcmask 1040384
        %v316 = vsel %vm315, %v281, %v307
        %v317 = vsel %vm315, %v288, %v314
        %v318 = vld [vmem:[%s2] sm:$0x3]
        %320 = vset.pattern.permute.xlu0 0
        %321 = vperm.xlu0 %320, %v318
        %v322 = vpop.permute.xlu0 %321
        %v324 = vadd.f32 %v316, %v322
        %v325 = vadd.f32 %v317, %v322
        %v326 = vmax.f32 %v324, 0.0
        %v327 = vmax.f32 %v325, 0.0
        %329 = vset.pattern.permute.xlu0 0
        %330 = vperm.xlu0 %329, %v257
        %v331 = vpop.permute.xlu0 %330
        %v333 = vmul.f32 %v331, %v326
        %v334 = vmul.f32 %v331, %v327
        %vm335 = vcmask 1041408
        %v336 = vsel %vm335, %v333, 0.0
        %v337 = vrot.slane %v336, 4
        %v338 = vadd.f32 %v336, %v337
        %v339 = vrot.slane %v338, 2
        %v340 = vadd.f32 %v338, %v339
        %v341 = vrot.slane %v340, 1
        %v342 = vadd.f32 %v340, %v341
        %v343 = vsel %vm335, %v334, 0.0
        %v344 = vrot.slane %v343, 4
        %v345 = vadd.f32 %v343, %v344
        %v346 = vrot.slane %v345, 2
        %v347 = vadd.f32 %v345, %v346
        %v348 = vrot.slane %v347, 1
        %v349 = vadd.f32 %v347, %v348
        %351 = vset.pattern.permute.xlu0 0
        %352 = vperm.xlu0 %351, %v258
        %v353 = vpop.permute.xlu0 %352
        %v355 = vmul.f32 %v353, %v326
        %v356 = vmul.f32 %v353, %v327
        %v357 = vsel %vm335, %v355, 0.0
        %v358 = vrot.slane %v357, 4
        %v359 = vadd.f32 %v357, %v358
        %v360 = vrot.slane %v359, 2
        %v361 = vadd.f32 %v359, %v360
        %v362 = vrot.slane %v361, 1
        %v363 = vadd.f32 %v361, %v362
        %v364 = vsel %vm335, %v356, 0.0
        %v365 = vrot.slane %v364, 4
        %v366 = vadd.f32 %v364, %v365
        %v367 = vrot.slane %v366, 2
        %v368 = vadd.f32 %v366, %v367
        %v369 = vrot.slane %v368, 1
        %v370 = vadd.f32 %v368, %v369
        %372 = vset.pattern.permute.xlu0 0
        %373 = vperm.xlu0 %372, %v259
        %v374 = vpop.permute.xlu0 %373
        %v376 = vmul.f32 %v374, %v326
        %v377 = vmul.f32 %v374, %v327
        %v378 = vsel %vm335, %v376, 0.0
        %v379 = vrot.slane %v378, 4
        %v380 = vadd.f32 %v378, %v379
        %v381 = vrot.slane %v380, 2
        %v382 = vadd.f32 %v380, %v381
        %v383 = vrot.slane %v382, 1
        %v384 = vadd.f32 %v382, %v383
        %v385 = vsel %vm335, %v377, 0.0
        %v386 = vrot.slane %v385, 4
        %v387 = vadd.f32 %v385, %v386
        %v388 = vrot.slane %v387, 2
        %v389 = vadd.f32 %v387, %v388
        %v390 = vrot.slane %v389, 1
        %v391 = vadd.f32 %v389, %v390
        %393 = vset.pattern.permute.xlu0 0
        %394 = vperm.xlu0 %393, %v260
        %v395 = vpop.permute.xlu0 %394
        %v397 = vmul.f32 %v395, %v326
        %v398 = vmul.f32 %v395, %v327
        %v399 = vsel %vm335, %v397, 0.0
        %v400 = vrot.slane %v399, 4
        %v401 = vadd.f32 %v399, %v400
        %v402 = vrot.slane %v401, 2
        %v403 = vadd.f32 %v401, %v402
        %v404 = vrot.slane %v403, 1
        %v405 = vadd.f32 %v403, %v404
        %v406 = vsel %vm335, %v398, 0.0
        %v407 = vrot.slane %v406, 4
        %v408 = vadd.f32 %v406, %v407
        %v409 = vrot.slane %v408, 2
        %v410 = vadd.f32 %v408, %v409
        %v411 = vrot.slane %v410, 1
        %v412 = vadd.f32 %v410, %v411
        %v413 = vsel %vm315, %v342, %v363
        %v414 = vsel %vm315, %v349, %v370
        %v415 = vsel %vm335, %v413, %v384
        %v416 = vsel %vm335, %v414, %v391
        %vm417 = vcmask 1042432
        %v418 = vsel %vm417, %v415, %v405
        %v419 = vsel %vm417, %v416, %v412
        %v420 = vld [vmem:[%s4] sm:$0xf]
        %422 = vset.pattern.permute.xlu0 0
        %423 = vperm.xlu0 %422, %v420
        %v424 = vpop.permute.xlu0 %423
        %v426 = vadd.f32 %v418, %v424
        %v427 = vadd.f32 %v419, %v424
        %428 = vst [vmem:[#allocation1] ss:$2 sm:$0xff] %v254
        %v429 = vld.sshfl [vmem:[#allocation1] sm:$0xff pattern:$0x75316420]
        %v430 = vld.sshfl [vmem:[#allocation1 + $0x8] sm:$0xff pattern:$0x75316420]
        %v433 = vadd.f32 %v426, %v429
        %v434 = vadd.f32 %v427, %v430
        %v435 = vmax.f32 %v433, 0.0
        %v436 = vmax.f32 %v434, 0.0
        %v439 = vrot.slane %v436, 4
        %v440 = vsel %vm274, %v435, %v439
        %442 = vst [vmem:[%s242] sm:$0xff] %v440
        %s443 = sand.u32 %s153, 1
        %s444 = scalar_lea.sflag [#allocation3], %s443
        %s445 = sand.u32 %s153, 1
        %s446 = smul.addr %s445, 8
        %s447 = scalar_lea.vmem [#allocation2], %s446
        // Predicated region
        $region41: #{tpu_custom_call.1} parent=39 // pred_check
          %p448 = pneg %p163
        $region42: #{tpu_custom_call.1} parent=39 // pred_check_branch
          %450 = sbr.rel (%p448) target = $region44
        $region43: #{tpu_custom_call.1} parent=39 // pred_region
          %s451 = smul.u32 2, %s24
          %453 = vsyncadd %s444, 0
          %s454 = smul.addr %s23, 2
          %s455 = sadd.s32 %s451, %s454
          %s456 = smul.addr %s455, 4
          %s457 = scalar_lea.hbm %s5, %s456
          %s459 = sshll.u32 %s447, 4
          %s460 = int_to_ptr.vmem [resolvable:$true] %s459
          %s461 = sshll.u32 %s457, 4
          %s462 = int_to_ptr.hbm [resolvable:$true] %s461
          %464 = dma.vmem_to_hbm [thread:$0]  %s460, 128, %s462, %s444
        $region44: #{tpu_custom_call.1} parent=39 // pred_fallthru
          _
      $region40: #{tpu_custom_call.1} parent=5 // pred_fallthru
        _
      %p465 = scmp.le.s32.totalorder 2, %s14
      // Predicated region
      $region45: #{tpu_custom_call.1} parent=5 // pred_check
        %p466 = pneg %p465
      $region46: #{tpu_custom_call.1} parent=5 // pred_check_branch
        %468 = sbr.rel (%p466) target = $region48
      $region47: #{tpu_custom_call.1} parent=5 // pred_region
        %s469 = ssub.s32 %s14, 2
        // Predicated region
        $region49: #{tpu_custom_call.1} parent=47 // pred_check
          %p470 = pneg %p169
        $region50: #{tpu_custom_call.1} parent=47 // pred_check_branch
          %472 = sbr.rel (%p470) target = $region52
        $region51: #{tpu_custom_call.1} parent=47 // pred_region
          %s473 = sand.u32 %s154, 1
          %s474 = scalar_lea.sflag [#allocation3], %s473
          %s475 = sand.u32 %s154, 1
          %s476 = smul.addr %s475, 8
          %s477 = scalar_lea.vmem [#allocation2], %s476
          %479 = dma.done %s474, 128
        $region52: #{tpu_custom_call.1} parent=47 // pred_fallthru
          _
      $region48: #{tpu_custom_call.1} parent=5 // pred_fallthru
        _
    $region6: #{tpu_custom_call.1} parent=1 // loop_footer
      %s18 = sadd.s32 1, %s14
    $region7: #{tpu_custom_call.1} parent=1 // loop_footer_branch
      %13 = sbr.rel target = $region3
    $region8: #{tpu_custom_call.1} parent=1 // loop_exit
      _
    %480 = vsyncpa [#allocation3], 1
    %s481 = scalar_lea.sflag [#allocation3], 1
    %482 = vsyncpa %s481, 1

</llo_original>
